<compile_context>
chip_gen: v5e
topology: v5e:2x2
jax: 0.10.0
libtpu: 0.0.40
codegen_flags: <defaults>
</compile_context>

<pallas_src>
import jax
import jax.numpy as jnp
from jax import lax
from jax.experimental import pallas as pl
from jax.experimental.pallas import tpu as pltpu


def _round_up(x, m):
    return (x + m - 1) // m * m


def _choose_batch_tile(B):
    """Largest sublane-aligned batch tile (<=512), but guarantee >=2 grid
    steps when possible so both v7x TensorCores get work."""
    tb = min(512, _round_up(B, 8))
    b_p = _round_up(B, tb)
    if b_p // tb < 2 and B > 8:
        tb = _round_up((B + 1) // 2, 8)
        b_p = _round_up(B, tb)
    return tb, b_p


def _make_mlp_kernel(repeat, use_bf16):
    mxu_dtype = jnp.bfloat16 if use_bf16 else jnp.float32

    def kernel(x_ref, w1_ref, b1_ref, w2_ref, b2_ref, alpha_ref, o_ref):
        # Weights / biases: whole-array resident blocks (constant index map,
        # single-buffered).
        w1 = w1_ref[...]                                   # (In_p, H_p)
        w2 = w2_ref[...]                                   # (H_p, Out_p)
        alpha = alpha_ref[0, 0]                            # PReLU scalar (SMEM)

        tb = x_ref.shape[0]
        # Hoisted bias broadcasts: JAX does not CSE broadcast_in_dim, so
        # without this the unrolled repeat loop re-materializes them.
        b1 = jnp.broadcast_to(b1_ref[...].astype(jnp.float32), (tb, w1.shape[1]))
        b2 = jnp.broadcast_to(b2_ref[...].astype(jnp.float32), (tb, w2.shape[1]))

        def one_pass(x):
            # fc1 (MXU, f32 accumulate) + bias + PReLU (VPU, f32)
            h = jnp.dot(x.astype(mxu_dtype), w1,
                        preferred_element_type=jnp.float32) + b1
            h = jnp.where(h > 0, h, alpha * h)
            # fc2 (MXU, f32 accumulate) + bias
            y = jnp.dot(h.astype(mxu_dtype), w2,
                        preferred_element_type=jnp.float32) + b2
            return y

        x = x_ref[...].astype(jnp.float32)                 # (TB, In_p)
        if repeat == 1:
            y = one_pass(x)
        else:
            # Full unroll only while the live (tb, hidden) f32 intermediates
            # stay out of the spill regime; partial unroll (2) otherwise.
            unroll = True if repeat <= 4 else 2
            y = lax.fori_loop(0, repeat, lambda _, v: one_pass(v), x,
                              unroll=unroll)
        o_ref[...] = y.astype(o_ref.dtype)

    return kernel


def mlp_forward(x, w1, b1, w2, b2, alpha, repeat=1, use_bf16=True):
    """x: (B, input_size) f32.
    w1: (input, hidden), b1: (hidden,) or (1, hidden),
    w2: (hidden, output), b2: (output,) or (1, output),
    alpha: scalar PReLU weight (shared over channels)."""
    B, in_size = x.shape
    hidden = w1.shape[1]
    out_size = w2.shape[1]
    if repeat > 1:
        assert in_size == out_size, "repeat > 1 requires input_size == output_size"

    # Lane-dense padding: every feature dim -> multiple of 128 (no masked
    # partial stores on the output).
    in_p = _round_up(in_size, 128)
    hid_p = _round_up(hidden, 128)
    out_p = _round_up(out_size, 128)

    tb, b_p = _choose_batch_tile(B)

    mxu_dtype = jnp.bfloat16 if use_bf16 else jnp.float32
    act_dtype = mxu_dtype  # feed the activation in MXU dtype (halves input DMA)
    w_itemsize = jnp.dtype(mxu_dtype).itemsize
    a_itemsize = jnp.dtype(act_dtype).itemsize

    # Zero-pad (zeros in padded weight rows/cols keep the math exact and the
    # padded activation columns stay identically zero across repeats).
    x_p = (jnp.zeros((b_p, in_p), act_dtype)
           .at[:B, :in_size].set(x.astype(act_dtype)))
    w1_p = (jnp.zeros((in_p, hid_p), mxu_dtype)
            .at[:in_size, :hidden].set(w1.astype(mxu_dtype)))
    b1_p = (jnp.zeros((1, hid_p), jnp.float32)
            .at[:, :hidden].set(jnp.reshape(b1, (1, -1)).astype(jnp.float32)))
    w2_p = (jnp.zeros((hid_p, out_p), mxu_dtype)
            .at[:hidden, :out_size].set(w2.astype(mxu_dtype)))
    b2_p = (jnp.zeros((1, out_p), jnp.float32)
            .at[:, :out_size].set(jnp.reshape(b2, (1, -1)).astype(jnp.float32)))
    alpha_s = jnp.asarray(alpha, jnp.float32).reshape(1, 1)

    # Explicit VMEM budget: activation in/out double-buffered, weights/biases
    # single-buffered (pl.Buffered(1)).
    vmem_bytes = (
        2 * tb * in_p * a_itemsize                       # input tiles (x2)
        + 2 * tb * out_p * 4                             # output tiles (x2, f32)
        + (in_p * hid_p + hid_p * out_p) * w_itemsize    # resident weights (x1)
        + (hid_p + out_p) * 4                            # resident biases
    )
    vmem_limit = int(min(64 << 20, max(32 << 20, 2 * vmem_bytes)))

    flops = 2 * repeat * b_p * (in_p * hid_p + hid_p * out_p)
    bytes_accessed = (
        b_p * in_p * a_itemsize
        + (in_p * hid_p + hid_p * out_p) * w_itemsize
        + (hid_p + out_p) * 4
        + b_p * out_p * 4
    )

    grid = (b_p // tb,)
    kernel = _make_mlp_kernel(repeat, use_bf16)

    out_padded = pl.pallas_call(
        kernel,
        out_shape=jax.ShapeDtypeStruct((b_p, out_p), jnp.float32),
        grid=grid,
        in_specs=[
            # Batch-tiled activation (pipelined across the parallel grid axis).
            pl.BlockSpec((tb, in_p), lambda i: (i, 0)),
            # Weights / biases: whole-array, constant index -> resident;
            # single-buffered (they never change across grid steps).
            pl.BlockSpec((in_p, hid_p), lambda i: (0, 0),
                         pipeline_mode=pl.Buffered(1)),
            pl.BlockSpec((1, hid_p), lambda i: (0, 0),
                         pipeline_mode=pl.Buffered(1)),
            pl.BlockSpec((hid_p, out_p), lambda i: (0, 0),
                         pipeline_mode=pl.Buffered(1)),
            pl.BlockSpec((1, out_p), lambda i: (0, 0),
                         pipeline_mode=pl.Buffered(1)),
            # PReLU alpha: (1,1) SMEM block.
            pl.BlockSpec((1, 1), lambda i: (0, 0),
                         memory_space=pltpu.MemorySpace.SMEM),
        ],
        out_specs=pl.BlockSpec((tb, out_p), lambda i: (i, 0)),
        compiler_params=pltpu.CompilerParams(
            dimension_semantics=("parallel",),
            vmem_limit_bytes=vmem_limit),
        cost_estimate=pl.CostEstimate(flops=flops, transcendentals=0,
                                      bytes_accessed=bytes_accessed),
    )(x_p, w1_p, b1_p, w2_p, b2_p, alpha_s)

    return out_padded[:B, :out_size]


def init_params(key, input_size, hidden_size, output_size):
    """Deterministic synthetic init (uniform, like torch Linear's scale)."""
    k1, k2, k3, k4 = jax.random.split(key, 4)
    lim1 = 1.0 / (input_size ** 0.5)
    lim2 = 1.0 / (hidden_size ** 0.5)
    w1 = jax.random.uniform(k1, (input_size, hidden_size), jnp.float32,
                            -lim1, lim1)
    b1 = jax.random.uniform(k2, (1, hidden_size), jnp.float32, -lim1, lim1)
    w2 = jax.random.uniform(k3, (hidden_size, output_size), jnp.float32,
                            -lim2, lim2)
    b2 = jax.random.uniform(k4, (1, output_size), jnp.float32, -lim2, lim2)
    alpha = jnp.full((1, 1), 0.25, dtype=jnp.float32)   # PReLU(init=0.25)
    return w1, b1, w2, b2, alpha


if __name__ == "__main__":
    # input_size == output_size so repeat > 1 is well-defined (as in PyTorch).
    batch, input_size, hidden_size, output_size, repeat = 8, 32, 64, 32, 2

    key = jax.random.PRNGKey(0)
    kx, kp = jax.random.split(key)
    x = jax.random.normal(kx, (batch, input_size), dtype=jnp.float32)
    w1, b1, w2, b2, alpha = init_params(kp, input_size, hidden_size,
                                        output_size)

    # Default fast path: bf16 MXU inputs, f32 accumulation.
    out_bf16 = jax.block_until_ready(
        mlp_forward(x, w1, b1, w2, b2, alpha, repeat=repeat, use_bf16=True))
    # Exact f32 path (for a tight reference check).
    out_f32 = jax.block_until_ready(
        mlp_forward(x, w1, b1, w2, b2, alpha, repeat=repeat, use_bf16=False))

    # Pure-JAX f32 reference.
    ref = x
    for _ in range(repeat):
        h = ref @ w1 + b1
        h = jnp.where(h > 0, h, alpha[0, 0] * h)
        ref = h @ w2 + b2

    # bf16-matched reference (same input/weight rounding, f32 accumulation).
    ref_bf16 = x
    for _ in range(repeat):
        h = jnp.dot(ref_bf16.astype(jnp.bfloat16), w1.astype(jnp.bfloat16),
                    preferred_element_type=jnp.float32) + b1
        h = jnp.where(h > 0, h, alpha[0, 0] * h)
        ref_bf16 = jnp.dot(h.astype(jnp.bfloat16), w2.astype(jnp.bfloat16),
                           preferred_element_type=jnp.float32) + b2

    assert out_f32.shape == (batch, output_size)
    assert out_bf16.shape == (batch, output_size)
    # Exact path matches the f32 reference tightly.
    assert jnp.allclose(out_f32, ref, atol=1e-5, rtol=1e-5)
    # bf16 path matches the bf16-matched reference tightly...
    assert jnp.allclose(out_bf16, ref_bf16, atol=1e-3, rtol=1e-3)
    # ...and the f32 reference up to expected bf16 rounding (not a bug).
    assert jnp.allclose(out_bf16, ref, atol=5e-2, rtol=5e-2)

    print("KERNEL_OK")
</pallas_src>

<mosaic_0001>
module attributes {stable_mosaic.version = 11 : i64} {
  func.func @kernel(%arg0: i32, %arg1: memref<8x128xbf16, #tpu.memory_space<vmem>>, %arg2: memref<128x128xbf16, #tpu.memory_space<vmem>>, %arg3: memref<1x128xf32, #tpu.memory_space<vmem>>, %arg4: memref<128x128xbf16, #tpu.memory_space<vmem>>, %arg5: memref<1x128xf32, #tpu.memory_space<vmem>>, %arg6: memref<1x1xf32, #tpu.memory_space<smem>>, %arg7: memref<8x128xf32, #tpu.memory_space<vmem>>) attributes {dimension_semantics = [#tpu.dimension_semantics<parallel>], iteration_bounds = array<i64: 1>, scalar_prefetch = 0 : i64, scratch_operands = 0 : i64, tpu.core_type = #tpu.core_type<tc>, window_params = [{transform_indices = @transform_0, window_bounds = array<i64: 8, 128>}, {pipeline_mode = #tpu.pipeline_mode<synchronous>, transform_indices = @transform_1, window_bounds = array<i64: 128, 128>}, {pipeline_mode = #tpu.pipeline_mode<synchronous>, transform_indices = @transform_2, window_bounds = array<i64: 1, 128>}, {pipeline_mode = #tpu.pipeline_mode<synchronous>, transform_indices = @transform_3, window_bounds = array<i64: 128, 128>}, {pipeline_mode = #tpu.pipeline_mode<synchronous>, transform_indices = @transform_4, window_bounds = array<i64: 1, 128>}, {transform_indices = @transform_5, window_bounds = array<i64: 1, 1>}, {transform_indices = @transform_6, window_bounds = array<i64: 8, 128>}]} {
    %c0 = arith.constant 0 : index
    %c0_0 = arith.constant 0 : index
    %0 = vector.load %arg2[%c0, %c0_0] : memref<128x128xbf16, #tpu.memory_space<vmem>>, vector<128x128xbf16>
    %c0_1 = arith.constant 0 : index
    %c0_2 = arith.constant 0 : index
    %1 = vector.load %arg4[%c0_1, %c0_2] : memref<128x128xbf16, #tpu.memory_space<vmem>>, vector<128x128xbf16>
    %c0_3 = arith.constant 0 : index
    %c0_4 = arith.constant 0 : index
    %2 = memref.load %arg6[%c0_3, %c0_4] : memref<1x1xf32, #tpu.memory_space<smem>>
    %c0_5 = arith.constant 0 : index
    %c0_6 = arith.constant 0 : index
    %3 = vector.load %arg3[%c0_5, %c0_6] : memref<1x128xf32, #tpu.memory_space<vmem>>, vector<1x128xf32>
    %4 = vector.shape_cast %3 : vector<1x128xf32> to vector<1x128xf32>
    %5 = vector.broadcast %4 : vector<1x128xf32> to vector<8x128xf32>
    %c0_7 = arith.constant 0 : index
    %c0_8 = arith.constant 0 : index
    %6 = vector.load %arg5[%c0_7, %c0_8] : memref<1x128xf32, #tpu.memory_space<vmem>>, vector<1x128xf32>
    %7 = vector.shape_cast %6 : vector<1x128xf32> to vector<1x128xf32>
    %8 = vector.broadcast %7 : vector<1x128xf32> to vector<8x128xf32>
    %c0_9 = arith.constant 0 : index
    %c0_10 = arith.constant 0 : index
    %9 = vector.load %arg1[%c0_9, %c0_10] : memref<8x128xbf16, #tpu.memory_space<vmem>>, vector<8x128xbf16>
    %10 = arith.extf %9 : vector<8x128xbf16> to vector<8x128xf32>
    %c0_i32 = arith.constant 0 : i32
    %11 = arith.truncf %10 : vector<8x128xf32> to vector<8x128xbf16>
    %cst = arith.constant dense<0.000000e+00> : vector<8x128xf32>
    %12 = tpu.matmul %11, %0, %cst {dimension_numbers = #tpu.dot_dimension_numbers<[1], [0], [0], [1], [0, 0, 1, 1], [], []>} : vector<8x128xbf16>, vector<128x128xbf16>, vector<8x128xf32> -> vector<8x128xf32>
    %13 = arith.addf %12, %5 : vector<8x128xf32>
    %cst_11 = arith.constant 0.000000e+00 : f32
    %14 = vector.broadcast %cst_11 : f32 to vector<8x128xf32>
    %15 = arith.cmpf ogt, %13, %14 : vector<8x128xf32>
    %16 = vector.broadcast %2 : f32 to vector<8x128xf32>
    %17 = arith.mulf %16, %13 : vector<8x128xf32>
    %18 = arith.select %15, %13, %17 : vector<8x128xi1>, vector<8x128xf32>
    %19 = arith.truncf %18 : vector<8x128xf32> to vector<8x128xbf16>
    %cst_12 = arith.constant dense<0.000000e+00> : vector<8x128xf32>
    %20 = tpu.matmul %19, %1, %cst_12 {dimension_numbers = #tpu.dot_dimension_numbers<[1], [0], [0], [1], [0, 0, 1, 1], [], []>} : vector<8x128xbf16>, vector<128x128xbf16>, vector<8x128xf32> -> vector<8x128xf32>
    %21 = arith.addf %20, %8 : vector<8x128xf32>
    %c1_i32 = arith.constant 1 : i32
    %22 = arith.truncf %21 : vector<8x128xf32> to vector<8x128xbf16>
    %cst_13 = arith.constant dense<0.000000e+00> : vector<8x128xf32>
    %23 = tpu.matmul %22, %0, %cst_13 {dimension_numbers = #tpu.dot_dimension_numbers<[1], [0], [0], [1], [0, 0, 1, 1], [], []>} : vector<8x128xbf16>, vector<128x128xbf16>, vector<8x128xf32> -> vector<8x128xf32>
    %24 = arith.addf %23, %5 : vector<8x128xf32>
    %cst_14 = arith.constant 0.000000e+00 : f32
    %25 = vector.broadcast %cst_14 : f32 to vector<8x128xf32>
    %26 = arith.cmpf ogt, %24, %25 : vector<8x128xf32>
    %27 = vector.broadcast %2 : f32 to vector<8x128xf32>
    %28 = arith.mulf %27, %24 : vector<8x128xf32>
    %29 = arith.select %26, %24, %28 : vector<8x128xi1>, vector<8x128xf32>
    %30 = arith.truncf %29 : vector<8x128xf32> to vector<8x128xbf16>
    %cst_15 = arith.constant dense<0.000000e+00> : vector<8x128xf32>
    %31 = tpu.matmul %30, %1, %cst_15 {dimension_numbers = #tpu.dot_dimension_numbers<[1], [0], [0], [1], [0, 0, 1, 1], [], []>} : vector<8x128xbf16>, vector<128x128xbf16>, vector<8x128xf32> -> vector<8x128xf32>
    %32 = arith.addf %31, %8 : vector<8x128xf32>
    %c0_16 = arith.constant 0 : index
    %c0_17 = arith.constant 0 : index
    %33 = vector.load %arg7[%c0_16, %c0_17] : memref<8x128xf32, #tpu.memory_space<vmem>>, vector<8x128xf32>
    tpu.vector_store %arg7[%c0_16, %c0_17], %32 {strides = array<i32>} : memref<8x128xf32, #tpu.memory_space<vmem>>, vector<8x128xf32>,
    return
  }
  func.func @transform_0(%arg0: i32) -> (i32, i32) {
    %c0_i32 = arith.constant 0 : i32
    %c0_i32_0 = arith.constant 0 : i32
    return %arg0, %c0_i32 : i32, i32
  }
  func.func @transform_1(%arg0: i32) -> (i32, i32) {
    %c0_i32 = arith.constant 0 : i32
    %c0_i32_0 = arith.constant 0 : i32
    %c0_i32_1 = arith.constant 0 : i32
    return %c0_i32, %c0_i32_0 : i32, i32
  }
  func.func @transform_2(%arg0: i32) -> (i32, i32) {
    %c0_i32 = arith.constant 0 : i32
    %c0_i32_0 = arith.constant 0 : i32
    %c0_i32_1 = arith.constant 0 : i32
    return %c0_i32, %c0_i32_0 : i32, i32
  }
  func.func @transform_3(%arg0: i32) -> (i32, i32) {
    %c0_i32 = arith.constant 0 : i32
    %c0_i32_0 = arith.constant 0 : i32
    %c0_i32_1 = arith.constant 0 : i32
    return %c0_i32, %c0_i32_0 : i32, i32
  }
  func.func @transform_4(%arg0: i32) -> (i32, i32) {
    %c0_i32 = arith.constant 0 : i32
    %c0_i32_0 = arith.constant 0 : i32
    %c0_i32_1 = arith.constant 0 : i32
    return %c0_i32, %c0_i32_0 : i32, i32
  }
  func.func @transform_5(%arg0: i32) -> (i32, i32) {
    %c0_i32 = arith.constant 0 : i32
    %c0_i32_0 = arith.constant 0 : i32
    %c0_i32_1 = arith.constant 0 : i32
    return %c0_i32, %c0_i32_0 : i32, i32
  }
  func.func @transform_6(%arg0: i32) -> (i32, i32) {
    %c0_i32 = arith.constant 0 : i32
    %c0_i32_0 = arith.constant 0 : i32
    return %arg0, %c0_i32 : i32, i32
  }
}

</mosaic_0001>

<llo_original>
// kernel: tpu_custom_call.1
$region0: #{tpu_custom_call.1}
  #allocation0 [shape = 'u32[]', space=smem, size = 0x4, offset = 0x4, fixed_abs, tag = 'smem constant byte address 0x4 - core index']
  #allocation1 [shape = 'u32[72,128]{1,0:T(1,128)}', space=vmem, size = 0x9000, scoped, tag = 'internal scratch']
  #allocation2 [shape = 'f32[1,1]{1,0:T(1,128)S(6)}', space=smem, size = 0x200, scoped, tag = 'scoped memory for tpu_custom_call.1']
  %s0 = inlined_call_operand.hbm [shape: bf16[8,128], index: 0, kind: input, shape index: {}]
  %s1 = inlined_call_operand.hbm [shape: bf16[128,128], index: 1, kind: input, shape index: {}]
  %s2 = inlined_call_operand.vmem [shape: f32[1,128], index: 2, kind: input, shape index: {}]
  %s3 = inlined_call_operand.hbm [shape: bf16[128,128], index: 3, kind: input, shape index: {}]
  %s4 = inlined_call_operand.vmem [shape: f32[1,128], index: 4, kind: input, shape index: {}]
  %s5 = inlined_call_operand.<no memory space> [shape: f32[1,1], index: 5, kind: input, shape index: {}]
  %s6 = inlined_call_operand.hbm [shape: f32[8,128], index: 6, kind: output, shape index: {}]
  %s7 = sld [smem:[#allocation0]]
  $region46: #{tpu_custom_call.1} parent=0
    _
  %s9 = ssub.s32 1, %s7
  %s10 = scalar_select 0, %s9, %s7
  %11 = sst [smem:[#allocation2]] %s5
  $region1: #{tpu_custom_call.1} parent=0
    #allocation3 [shape = 'u8[2048]{0}', space=vmem, size = 0x800, scoped, tag = 'input window, operand 0, single buffered']
    #allocation4 [shape = 's32[1]{0}', space=sflag, size = 0x4, scoped, tag = 'scoped memory for tpu_custom_call.1']
    #allocation5 [shape = 's32[1]{0}', space=sflag, size = 0x4, scoped, tag = 'scoped memory for tpu_custom_call.1']
    #allocation6 [shape = 'u8[32768]{0}', space=vmem, size = 0x8000, scoped, tag = 'input window, operand 1, single buffered']
    #allocation7 [shape = 's32[1]{0}', space=sflag, size = 0x4, scoped, tag = 'scoped memory for tpu_custom_call.1']
    #allocation8 [shape = 'u8[32768]{0}', space=vmem, size = 0x8000, scoped, tag = 'input window, operand 3, single buffered']
    #allocation9 [shape = 'u8[4096]{0}', space=vmem, size = 0x1000, scoped, tag = 'output window, operand 0, single buffered']
    %12 = vsyncpa [#allocation4], 0
    %13 = vsyncpa [#allocation7], 0
    %14 = vsyncpa [#allocation5], 0
    // Predicated region
    $region2: #{tpu_custom_call.1} parent=1 // pred_check
      _
    $region3: #{tpu_custom_call.1} parent=1 // pred_check_branch
      %16 = sbr.rel (0) target = $region5
    $region4: #{tpu_custom_call.1} parent=1 // pred_region
      %18 = vsyncadd [#allocation4], 0
      %s20 = sshll.u32 %s0, 4
      %s21 = int_to_ptr.hbm [resolvable:$true] %s20
      %s22 = sshll.u32 [#allocation3], 4
      %s23 = int_to_ptr.vmem [resolvable:$true] %s22
      %25 = dma.hbm_to_vmem [thread:$0]  %s21, 64, %s23, [#allocation4]
    $region5: #{tpu_custom_call.1} parent=1 // pred_fallthru
      _
    // Predicated region
    $region6: #{tpu_custom_call.1} parent=1 // pred_check
      _
    $region7: #{tpu_custom_call.1} parent=1 // pred_check_branch
      %27 = sbr.rel (0) target = $region9
    $region8: #{tpu_custom_call.1} parent=1 // pred_region
      %29 = vsyncadd [#allocation7], 0
      %s30 = sshll.u32 %s1, 4
      %s31 = int_to_ptr.hbm [resolvable:$true] %s30
      %s32 = sshll.u32 [#allocation6], 4
      %s33 = int_to_ptr.vmem [resolvable:$true] %s32
      %38 = dma.hbm_to_vmem [thread:$0]  %s31, 1024, %s33, [#allocation7], 64, 64, 4
    $region9: #{tpu_custom_call.1} parent=1 // pred_fallthru
      _
    // Predicated region
    $region10: #{tpu_custom_call.1} parent=1 // pred_check
      _
    $region11: #{tpu_custom_call.1} parent=1 // pred_check_branch
      %40 = sbr.rel (0) target = $region13
    $region12: #{tpu_custom_call.1} parent=1 // pred_region
      _
    $region13: #{tpu_custom_call.1} parent=1 // pred_fallthru
      _
    // Predicated region
    $region14: #{tpu_custom_call.1} parent=1 // pred_check
      _
    $region15: #{tpu_custom_call.1} parent=1 // pred_check_branch
      %42 = sbr.rel (0) target = $region17
    $region16: #{tpu_custom_call.1} parent=1 // pred_region
      %44 = vsyncadd [#allocation7], 0
      %s45 = sshll.u32 %s3, 4
      %s46 = int_to_ptr.hbm [resolvable:$true] %s45
      %s47 = sshll.u32 [#allocation8], 4
      %s48 = int_to_ptr.vmem [resolvable:$true] %s47
      %53 = dma.hbm_to_vmem [thread:$0]  %s46, 1024, %s48, [#allocation7], 64, 64, 4
    $region17: #{tpu_custom_call.1} parent=1 // pred_fallthru
      _
    // Predicated region
    $region18: #{tpu_custom_call.1} parent=1 // pred_check
      _
    $region19: #{tpu_custom_call.1} parent=1 // pred_check_branch
      %55 = sbr.rel (0) target = $region21
    $region20: #{tpu_custom_call.1} parent=1 // pred_region
      _
    $region21: #{tpu_custom_call.1} parent=1 // pred_fallthru
      _
    // Predicated region
    $region22: #{tpu_custom_call.1} parent=1 // pred_check
      _
    $region23: #{tpu_custom_call.1} parent=1 // pred_check_branch
      %57 = sbr.rel (0) target = $region25
    $region24: #{tpu_custom_call.1} parent=1 // pred_region
      _
    $region25: #{tpu_custom_call.1} parent=1 // pred_fallthru
      _
    // Predicated region
    $region26: #{tpu_custom_call.1} parent=1 // pred_check
      _
    $region27: #{tpu_custom_call.1} parent=1 // pred_check_branch
      %59 = sbr.rel (0) target = $region29
    $region28: #{tpu_custom_call.1} parent=1 // pred_region
      %61 = dma.done [#allocation4], 64
    $region29: #{tpu_custom_call.1} parent=1 // pred_fallthru
      _
    // Predicated region
    $region30: #{tpu_custom_call.1} parent=1 // pred_check
      _
    $region31: #{tpu_custom_call.1} parent=1 // pred_check_branch
      %63 = sbr.rel (0) target = $region33
    $region32: #{tpu_custom_call.1} parent=1 // pred_region
      %65 = dma.done [#allocation7], 1024
    $region33: #{tpu_custom_call.1} parent=1 // pred_fallthru
      _
    // Predicated region
    $region34: #{tpu_custom_call.1} parent=1 // pred_check
      _
    $region35: #{tpu_custom_call.1} parent=1 // pred_check_branch
      %67 = sbr.rel (0) target = $region37
    $region36: #{tpu_custom_call.1} parent=1 // pred_region
      %69 = dma.done [#allocation7], 1024
    $region37: #{tpu_custom_call.1} parent=1 // pred_fallthru
      _
    %v70 = vld [vmem:[#allocation6] sm:$0xf]
    %v71 = vld [vmem:[#allocation6 + $0x4] sm:$0xf]
    %v72 = vld [vmem:[#allocation6 + $0x8] sm:$0xf]
    %v73 = vld [vmem:[#allocation6 + $0xc] sm:$0xf]
    %v74 = vld [vmem:[#allocation6 + $0x10] sm:$0xf]
    %v75 = vld [vmem:[#allocation6 + $0x14] sm:$0xf]
    %v76 = vld [vmem:[#allocation6 + $0x18] sm:$0xf]
    %v77 = vld [vmem:[#allocation6 + $0x1c] sm:$0xf]
    %v78 = vld [vmem:[#allocation6 + $0x20] sm:$0xf]
    %v79 = vld [vmem:[#allocation6 + $0x24] sm:$0xf]
    %v80 = vld [vmem:[#allocation6 + $0x28] sm:$0xf]
    %v81 = vld [vmem:[#allocation6 + $0x2c] sm:$0xf]
    %v82 = vld [vmem:[#allocation6 + $0x30] sm:$0xf]
    %v83 = vld [vmem:[#allocation6 + $0x34] sm:$0xf]
    %v84 = vld [vmem:[#allocation6 + $0x38] sm:$0xf]
    %v85 = vld [vmem:[#allocation6 + $0x3c] sm:$0xf]
    %v86 = vld [vmem:[#allocation8] sm:$0xf]
    %v87 = vld [vmem:[#allocation8 + $0x4] sm:$0xf]
    %v88 = vld [vmem:[#allocation8 + $0x8] sm:$0xf]
    %v89 = vld [vmem:[#allocation8 + $0xc] sm:$0xf]
    %v90 = vld [vmem:[#allocation8 + $0x10] sm:$0xf]
    %v91 = vld [vmem:[#allocation8 + $0x14] sm:$0xf]
    %v92 = vld [vmem:[#allocation8 + $0x18] sm:$0xf]
    %v93 = vld [vmem:[#allocation8 + $0x1c] sm:$0xf]
    %v94 = vld [vmem:[#allocation8 + $0x20] sm:$0xf]
    %v95 = vld [vmem:[#allocation8 + $0x24] sm:$0xf]
    %v96 = vld [vmem:[#allocation8 + $0x28] sm:$0xf]
    %v97 = vld [vmem:[#allocation8 + $0x2c] sm:$0xf]
    %v98 = vld [vmem:[#allocation8 + $0x30] sm:$0xf]
    %v99 = vld [vmem:[#allocation8 + $0x34] sm:$0xf]
    %v100 = vld [vmem:[#allocation8 + $0x38] sm:$0xf]
    %v101 = vld [vmem:[#allocation8 + $0x3c] sm:$0xf]
    %s102 = sld [smem:[#allocation2]]
    %v103 = vld [vmem:[%s2] sm:$0x1]
    %v105 = vperm.slane %v103, 0
    %v107 = vld [vmem:[%s4] sm:$0x1]
    %v109 = vperm.slane %v107, 0
    %v111 = vld [vmem:[#allocation3] sm:$0xf]
    %v128 = vunpack.c.l.b16 %v70
    %v129 = vunpack.c.l.b16 %v71
    %v130 = vunpack.c.l.b16 %v72
    %v131 = vunpack.c.l.b16 %v73
    %v132 = vunpack.c.l.b16 %v74
    %v133 = vunpack.c.l.b16 %v75
    %v134 = vunpack.c.l.b16 %v76
    %v135 = vunpack.c.l.b16 %v77
    %v136 = vunpack.c.l.b16 %v78
    %v137 = vunpack.c.l.b16 %v79
    %v138 = vunpack.c.l.b16 %v80
    %v139 = vunpack.c.l.b16 %v81
    %v140 = vunpack.c.l.b16 %v82
    %v141 = vunpack.c.l.b16 %v83
    %v142 = vunpack.c.l.b16 %v84
    %v143 = vunpack.c.l.b16 %v85
    %v144 = vpack.c.b16 %v129, %v128
    %v145 = vpack.c.b16 %v131, %v130
    %v146 = vpack.c.b16 %v133, %v132
    %v147 = vpack.c.b16 %v135, %v134
    %v148 = vpack.c.b16 %v137, %v136
    %v149 = vpack.c.b16 %v139, %v138
    %v150 = vpack.c.b16 %v141, %v140
    %v151 = vpack.c.b16 %v143, %v142
    %160 = vmatpush.bf16.msra.mxu0 %v151
    %161 = vmatpush.bf16.msra.mxu0 %v150
    %162 = vmatpush.bf16.msra.mxu0 %v149
    %163 = vmatpush.bf16.msra.mxu0 %v148
    %164 = vmatpush.bf16.msra.mxu0 %v147
    %165 = vmatpush.bf16.msra.mxu0 %v146
    %166 = vmatpush.bf16.msra.mxu0 %v145
    %167 = vmatpush.bf16.msra.mxu0 %v144
    %168 = vmatmul.bf16.gmra.mxu0 %v111
    %v169 = vpop.f32.mrf.mxu0
    %v170 = vadd.f32 %v105, %v169
    %v171 = vpop.f32.mrf.mxu0
    %172 = vdwg.mxu0
    %vm173 = vcmp.gt.f32.partialorder %v170, 0.0
    %v174 = vstv %s102
    %v175 = vmul.f32 %v174, %v170
    %v176 = vsel %vm173, %v170, %v175
    %v177 = vpack.c.bf16 %v176, %v176
    %v194 = vunpack.c.l.b16 %v86
    %v195 = vunpack.c.l.b16 %v87
    %v196 = vunpack.c.l.b16 %v88
    %v197 = vunpack.c.l.b16 %v89
    %v198 = vunpack.c.l.b16 %v90
    %v199 = vunpack.c.l.b16 %v91
    %v200 = vunpack.c.l.b16 %v92
    %v201 = vunpack.c.l.b16 %v93
    %v202 = vunpack.c.l.b16 %v94
    %v203 = vunpack.c.l.b16 %v95
    %v204 = vunpack.c.l.b16 %v96
    %v205 = vunpack.c.l.b16 %v97
    %v206 = vunpack.c.l.b16 %v98
    %v207 = vunpack.c.l.b16 %v99
    %v208 = vunpack.c.l.b16 %v100
    %v209 = vunpack.c.l.b16 %v101
    %v210 = vpack.c.b16 %v195, %v194
    %v211 = vpack.c.b16 %v197, %v196
    %v212 = vpack.c.b16 %v199, %v198
    %v213 = vpack.c.b16 %v201, %v200
    %v214 = vpack.c.b16 %v203, %v202
    %v215 = vpack.c.b16 %v205, %v204
    %v216 = vpack.c.b16 %v207, %v206
    %v217 = vpack.c.b16 %v209, %v208
    %226 = vmatpush.bf16.msra.mxu0 %v217
    %227 = vmatpush.bf16.msra.mxu0 %v216
    %228 = vmatpush.bf16.msra.mxu0 %v215
    %229 = vmatpush.bf16.msra.mxu0 %v214
    %230 = vmatpush.bf16.msra.mxu0 %v213
    %231 = vmatpush.bf16.msra.mxu0 %v212
    %232 = vmatpush.bf16.msra.mxu0 %v211
    %233 = vmatpush.bf16.msra.mxu0 %v210
    %234 = vmatmul.bf16.gmra.mxu0 %v177
    %v235 = vpop.f32.mrf.mxu0
    %v236 = vadd.f32 %v109, %v235
    %v237 = vpop.f32.mrf.mxu0
    %238 = vdwg.mxu0
    %v239 = vpack.c.bf16 %v236, %v236
    %240 = vmatpush.bf16.msra.mxu0 %v151
    %241 = vmatpush.bf16.msra.mxu0 %v150
    %242 = vmatpush.bf16.msra.mxu0 %v149
    %243 = vmatpush.bf16.msra.mxu0 %v148
    %244 = vmatpush.bf16.msra.mxu0 %v147
    %245 = vmatpush.bf16.msra.mxu0 %v146
    %246 = vmatpush.bf16.msra.mxu0 %v145
    %247 = vmatpush.bf16.msra.mxu0 %v144
    %248 = vmatmul.bf16.gmra.mxu0 %v239
    %v249 = vpop.f32.mrf.mxu0
    %v250 = vadd.f32 %v105, %v249
    %v251 = vpop.f32.mrf.mxu0
    %252 = vdwg.mxu0
    %vm253 = vcmp.gt.f32.partialorder %v250, 0.0
    %v254 = vmul.f32 %v174, %v250
    %v255 = vsel %vm253, %v250, %v254
    %v256 = vpack.c.bf16 %v255, %v255
    %257 = vmatpush.bf16.msra.mxu0 %v217
    %258 = vmatpush.bf16.msra.mxu0 %v216
    %259 = vmatpush.bf16.msra.mxu0 %v215
    %260 = vmatpush.bf16.msra.mxu0 %v214
    %261 = vmatpush.bf16.msra.mxu0 %v213
    %262 = vmatpush.bf16.msra.mxu0 %v212
    %263 = vmatpush.bf16.msra.mxu0 %v211
    %264 = vmatpush.bf16.msra.mxu0 %v210
    %265 = vmatmul.bf16.gmra.mxu0 %v256
    %v266 = vpop.f32.mrf.mxu0
    %v267 = vadd.f32 %v109, %v266
    %v268 = vpop.f32.mrf.mxu0
    %269 = vdwg.mxu0
    %270 = vst [vmem:[#allocation9] sm:$0xff] %v267
    // Predicated region
    $region38: #{tpu_custom_call.1} parent=1 // pred_check
      _
    $region39: #{tpu_custom_call.1} parent=1 // pred_check_branch
      %272 = sbr.rel (0) target = $region41
    $region40: #{tpu_custom_call.1} parent=1 // pred_region
      %274 = vsyncadd [#allocation5], 0
      %s276 = sshll.u32 [#allocation9], 4
      %s277 = int_to_ptr.vmem [resolvable:$true] %s276
      %s278 = sshll.u32 %s6, 4
      %s279 = int_to_ptr.hbm [resolvable:$true] %s278
      %281 = dma.vmem_to_hbm [thread:$0]  %s277, 128, %s279, [#allocation5]
    $region41: #{tpu_custom_call.1} parent=1 // pred_fallthru
      _
    // Predicated region
    $region42: #{tpu_custom_call.1} parent=1 // pred_check
      _
    $region43: #{tpu_custom_call.1} parent=1 // pred_check_branch
      %283 = sbr.rel (0) target = $region45
    $region44: #{tpu_custom_call.1} parent=1 // pred_region
      %285 = dma.done [#allocation5], 128
    $region45: #{tpu_custom_call.1} parent=1 // pred_fallthru
      _
    %286 = vsyncpa [#allocation4], 1
    %287 = vsyncpa [#allocation7], 1
    %288 = vsyncpa [#allocation5], 1

</llo_original>
